<compile_context>
chip_gen: v7x
topology: tpu7x:2x2x1
jax: 0.10.0
libtpu: 0.0.40
codegen_flags: <defaults>
</compile_context>

<pallas_src>
import functools

import jax
import jax.numpy as jnp
from jax.experimental import pallas as pl
from jax.experimental.pallas import tpu as pltpu


def _round_up(n, m):
    return ((n + m - 1) // m) * m


def _mlp_kernel(x_ref, w1_ref, b1_ref, w2_ref, b2_ref, o_ref):
    # Cast x to the MXU dtype (bf16) inside the kernel: the HBM stream stays
    # unpadded / un-cast (no wrapper copy) and the cast rides on the VPU.
    x = x_ref[...].astype(w1_ref.dtype)
    # fc1 + ReLU: bf16 operands on the MXU, f32 accumulation, f32 bias/ReLU.
    h1 = jnp.dot(x, w1_ref[...], preferred_element_type=jnp.float32)
    h1 = jnp.maximum(h1 + b1_ref[...], 0.0)
    # fc2 + ReLU: cast activations back to the weight dtype (bf16) for the MXU.
    h2 = jnp.dot(h1.astype(w2_ref.dtype), w2_ref[...],
                 preferred_element_type=jnp.float32)
    o_ref[...] = jnp.maximum(h2 + b2_ref[...], 0.0).astype(o_ref.dtype)


def _vmem_estimate_bytes(tb, d_in, h1_p, h2_p, in_bytes, out_bytes):
    """Rough per-call VMEM footprint for the chosen batch tile."""
    weights = d_in * h1_p * 2 + h1_p * h2_p * 2 + (h1_p + h2_p) * 4  # single-buffered
    x_tiles = 2 * tb * d_in * in_bytes                               # double-buffered in
    o_tiles = 2 * tb * h2_p * out_bytes                              # double-buffered out
    live = tb * d_in * 2 + tb * h1_p * (4 + 2) + tb * h2_p * 4       # kernel temporaries
    return weights + x_tiles + o_tiles + live


@functools.partial(jax.jit,
                   static_argnames=("block_b", "out_dtype", "return_padded"))
def attribute_network_forward(x, w1, b1, w2, b2, *, block_b=1024,
                              out_dtype=None, return_padded=False):
    """Forward pass of AttributeNetwork.

    x:  [B, D_in]    (any float dtype; returned in out_dtype or x.dtype)
    w1: [D_in, H1]   (pre-transposed vs. PyTorch nn.Linear.weight)
    b1: [1, H1]
    w2: [H1, H2]
    b2: [1, H2]
    """
    B, d_in = x.shape
    h1_dim = w1.shape[1]
    h2_dim = w2.shape[1]
    out_dtype = x.dtype if out_dtype is None else out_dtype

    compute_dtype = jnp.bfloat16
    in_bytes = jnp.dtype(x.dtype).itemsize
    out_bytes = jnp.dtype(out_dtype).itemsize

    # Lane (output-feature) dims of the weights are zero-padded to multiples
    # of 128 so both matmuls and the output store are lane-dense.  x's K dim
    # is NOT padded: the (tb, d_in) block equals the full array dim (legal),
    # and the zero K rows of a padded w1 would never be needed anyway.
    h1_p = _round_up(h1_dim, 128)
    h2_p = _round_up(h2_dim, 128)

    # Batch tile: multiple of 16 (bf16 sublane packing), defensively rounded
    # block_b, and capped so large B gives >= ~8 "parallel" grid steps
    # (v7x megacore sharding + pipeline overlap).
    block_b = max(16, _round_up(block_b, 16))
    tb = min(block_b, max(16, _round_up(pl.cdiv(B, 8), 16)))

    # Re-derive the tile against a VMEM budget that also fits v7x (64 MiB).
    vmem_budget = 48 << 20
    while tb > 16 and _vmem_estimate_bytes(
            tb, d_in, h1_p, h2_p, in_bytes, out_bytes) > vmem_budget:
        tb = max(16, _round_up(tb // 2, 16))
    # NOTE: if the bf16 weights alone exceed the budget (very large D_in*H1),
    # the right fix is a K-tiled grid axis with an f32 accumulator scratch
    # (pl.when init/finalize), not shrinking the batch tile further.

    b_p = _round_up(B, tb)
    grid = (b_p // tb,)

    # Weights/biases: pad feature dims only (cheap, parameter-sized copies).
    w1p = jnp.zeros((d_in, h1_p), compute_dtype).at[:, :h1_dim].set(
        w1.astype(compute_dtype))
    w2p = jnp.zeros((h1_p, h2_p), compute_dtype).at[:h1_dim, :h2_dim].set(
        w2.astype(compute_dtype))
    b1p = jnp.zeros((1, h1_p), jnp.float32).at[:, :h1_dim].set(
        b1.reshape(1, h1_dim).astype(jnp.float32))
    b2p = jnp.zeros((1, h2_p), jnp.float32).at[:, :h2_dim].set(
        b2.reshape(1, h2_dim).astype(jnp.float32))

    # x passes through untouched; only zero-pad batch rows if B % tb != 0.
    xin = x if b_p == B else jnp.pad(x, ((0, b_p - B), (0, 0)))

    est = _vmem_estimate_bytes(tb, d_in, h1_p, h2_p, in_bytes, out_bytes)
    vmem_limit = int(min(64 << 20, max(2 * est, 32 << 20)))

    const = dict(pipeline_mode=pl.Buffered(1))  # resident blocks: single buffer

    out_padded = pl.pallas_call(
        _mlp_kernel,
        out_shape=jax.ShapeDtypeStruct((b_p, h2_p), out_dtype),
        grid=grid,
        in_specs=[
            # x: tiled over batch, software-pipelined (default double buffer).
            pl.BlockSpec((tb, d_in), lambda i: (i, 0)),
            # Weights / biases: constant block index -> stay VMEM-resident
            # across all grid steps; single-buffered since they never change.
            pl.BlockSpec((d_in, h1_p), lambda i: (0, 0), **const),
            pl.BlockSpec((1, h1_p), lambda i: (0, 0), **const),
            pl.BlockSpec((h1_p, h2_p), lambda i: (0, 0), **const),
            pl.BlockSpec((1, h2_p), lambda i: (0, 0), **const),
        ],
        out_specs=pl.BlockSpec((tb, h2_p), lambda i: (i, 0)),
        compiler_params=pltpu.CompilerParams(
            dimension_semantics=("parallel",),
            vmem_limit_bytes=vmem_limit,
        ),
    )(xin, w1p, b1p, w2p, b2p)

    if return_padded:
        # Let the consumer fuse the slice/cast instead of materializing it.
        return out_padded
    return out_padded[:B, :h2_dim]


def _init_params(key, input_size, hidden1_size, hidden2_size, dtype=jnp.float32):
    # Deterministic synthetic init (uniform fan-in scaling, like nn.Linear).
    k1, k2, k3, k4 = jax.random.split(key, 4)
    lim1 = 1.0 / (input_size ** 0.5)
    lim2 = 1.0 / (hidden1_size ** 0.5)
    w1 = jax.random.uniform(k1, (input_size, hidden1_size), dtype, -lim1, lim1)
    b1 = jax.random.uniform(k2, (1, hidden1_size), dtype, -lim1, lim1)
    w2 = jax.random.uniform(k3, (hidden1_size, hidden2_size), dtype, -lim2, lim2)
    b2 = jax.random.uniform(k4, (1, hidden2_size), dtype, -lim2, lim2)
    return w1, b1, w2, b2


if __name__ == "__main__":
    key = jax.random.PRNGKey(0)
    kx, kp = jax.random.split(key)

    batch = 8
    input_size = 32
    hidden1_size = 64
    hidden2_size = 32

    x = jax.random.normal(kx, (batch, input_size), dtype=jnp.float32)
    w1, b1, w2, b2 = _init_params(kp, input_size, hidden1_size, hidden2_size)

    out = attribute_network_forward(x, w1, b1, w2, b2)
    out = jax.block_until_ready(out)
    assert out.shape == (batch, hidden2_size)
    assert out.dtype == x.dtype

    # Pure-JAX reference mirroring the kernel's bf16-operand / f32-accum path.
    f32 = jnp.float32
    xb = x.astype(jnp.bfloat16).astype(f32)
    w1b = w1.astype(jnp.bfloat16).astype(f32)
    w2b = w2.astype(jnp.bfloat16).astype(f32)
    h1 = jnp.maximum(xb @ w1b + b1.astype(f32), 0.0)
    h1b = h1.astype(jnp.bfloat16).astype(f32)
    ref = jnp.maximum(h1b @ w2b + b2.astype(f32), 0.0)
    assert jnp.allclose(out.astype(f32), ref, atol=1e-2, rtol=1e-2)

    print("KERNEL_OK")
</pallas_src>

<mosaic_0001>
module attributes {stable_mosaic.version = 11 : i64} {
  func.func @_mlp_kernel(%arg0: i32, %arg1: memref<16x32xf32, #tpu.memory_space<vmem>>, %arg2: memref<32x128xbf16, #tpu.memory_space<vmem>>, %arg3: memref<1x128xf32, #tpu.memory_space<vmem>>, %arg4: memref<128x128xbf16, #tpu.memory_space<vmem>>, %arg5: memref<1x128xf32, #tpu.memory_space<vmem>>, %arg6: memref<16x128xf32, #tpu.memory_space<vmem>>) attributes {dimension_semantics = [#tpu.dimension_semantics<parallel>], iteration_bounds = array<i64: 1>, scalar_prefetch = 0 : i64, scratch_operands = 0 : i64, tpu.core_type = #tpu.core_type<tc>, window_params = [{transform_indices = @transform_0, window_bounds = array<i64: 16, 32>}, {pipeline_mode = #tpu.pipeline_mode<synchronous>, transform_indices = @transform_1, window_bounds = array<i64: 32, 128>}, {pipeline_mode = #tpu.pipeline_mode<synchronous>, transform_indices = @transform_2, window_bounds = array<i64: 1, 128>}, {pipeline_mode = #tpu.pipeline_mode<synchronous>, transform_indices = @transform_3, window_bounds = array<i64: 128, 128>}, {pipeline_mode = #tpu.pipeline_mode<synchronous>, transform_indices = @transform_4, window_bounds = array<i64: 1, 128>}, {transform_indices = @transform_5, window_bounds = array<i64: 16, 128>}]} {
    %c0 = arith.constant 0 : index
    %c0_0 = arith.constant 0 : index
    %0 = vector.load %arg1[%c0, %c0_0] : memref<16x32xf32, #tpu.memory_space<vmem>>, vector<16x32xf32>
    %1 = arith.truncf %0 : vector<16x32xf32> to vector<16x32xbf16>
    %c0_1 = arith.constant 0 : index
    %c0_2 = arith.constant 0 : index
    %2 = vector.load %arg2[%c0_1, %c0_2] : memref<32x128xbf16, #tpu.memory_space<vmem>>, vector<32x128xbf16>
    %cst = arith.constant dense<0.000000e+00> : vector<16x128xf32>
    %3 = tpu.matmul %1, %2, %cst {dimension_numbers = #tpu.dot_dimension_numbers<[1], [0], [0], [1], [0, 0, 1, 1], [], []>} : vector<16x32xbf16>, vector<32x128xbf16>, vector<16x128xf32> -> vector<16x128xf32>
    %c0_3 = arith.constant 0 : index
    %c0_4 = arith.constant 0 : index
    %4 = vector.load %arg3[%c0_3, %c0_4] : memref<1x128xf32, #tpu.memory_space<vmem>>, vector<1x128xf32>
    %5 = vector.broadcast %4 : vector<1x128xf32> to vector<16x128xf32>
    %6 = arith.addf %3, %5 : vector<16x128xf32>
    %cst_5 = arith.constant 0.000000e+00 : f32
    %7 = vector.broadcast %cst_5 : f32 to vector<16x128xf32>
    %8 = arith.maximumf %6, %7 : vector<16x128xf32>
    %9 = arith.truncf %8 : vector<16x128xf32> to vector<16x128xbf16>
    %c0_6 = arith.constant 0 : index
    %c0_7 = arith.constant 0 : index
    %10 = vector.load %arg4[%c0_6, %c0_7] : memref<128x128xbf16, #tpu.memory_space<vmem>>, vector<128x128xbf16>
    %cst_8 = arith.constant dense<0.000000e+00> : vector<16x128xf32>
    %11 = tpu.matmul %9, %10, %cst_8 {dimension_numbers = #tpu.dot_dimension_numbers<[1], [0], [0], [1], [0, 0, 1, 1], [], []>} : vector<16x128xbf16>, vector<128x128xbf16>, vector<16x128xf32> -> vector<16x128xf32>
    %c0_9 = arith.constant 0 : index
    %c0_10 = arith.constant 0 : index
    %12 = vector.load %arg5[%c0_9, %c0_10] : memref<1x128xf32, #tpu.memory_space<vmem>>, vector<1x128xf32>
    %13 = vector.broadcast %12 : vector<1x128xf32> to vector<16x128xf32>
    %14 = arith.addf %11, %13 : vector<16x128xf32>
    %cst_11 = arith.constant 0.000000e+00 : f32
    %15 = vector.broadcast %cst_11 : f32 to vector<16x128xf32>
    %16 = arith.maximumf %14, %15 : vector<16x128xf32>
    %c0_12 = arith.constant 0 : index
    %c0_13 = arith.constant 0 : index
    %17 = vector.load %arg6[%c0_12, %c0_13] : memref<16x128xf32, #tpu.memory_space<vmem>>, vector<16x128xf32>
    tpu.vector_store %arg6[%c0_12, %c0_13], %16 {strides = array<i32>} : memref<16x128xf32, #tpu.memory_space<vmem>>, vector<16x128xf32>,
    return
  }
  func.func @transform_0(%arg0: i32) -> (i32, i32) {
    %c0_i32 = arith.constant 0 : i32
    %c0_i32_0 = arith.constant 0 : i32
    return %arg0, %c0_i32 : i32, i32
  }
  func.func @transform_1(%arg0: i32) -> (i32, i32) {
    %c0_i32 = arith.constant 0 : i32
    %c0_i32_0 = arith.constant 0 : i32
    %c0_i32_1 = arith.constant 0 : i32
    return %c0_i32, %c0_i32_0 : i32, i32
  }
  func.func @transform_2(%arg0: i32) -> (i32, i32) {
    %c0_i32 = arith.constant 0 : i32
    %c0_i32_0 = arith.constant 0 : i32
    %c0_i32_1 = arith.constant 0 : i32
    return %c0_i32, %c0_i32_0 : i32, i32
  }
  func.func @transform_3(%arg0: i32) -> (i32, i32) {
    %c0_i32 = arith.constant 0 : i32
    %c0_i32_0 = arith.constant 0 : i32
    %c0_i32_1 = arith.constant 0 : i32
    return %c0_i32, %c0_i32_0 : i32, i32
  }
  func.func @transform_4(%arg0: i32) -> (i32, i32) {
    %c0_i32 = arith.constant 0 : i32
    %c0_i32_0 = arith.constant 0 : i32
    %c0_i32_1 = arith.constant 0 : i32
    return %c0_i32, %c0_i32_0 : i32, i32
  }
  func.func @transform_5(%arg0: i32) -> (i32, i32) {
    %c0_i32 = arith.constant 0 : i32
    %c0_i32_0 = arith.constant 0 : i32
    return %arg0, %c0_i32 : i32, i32
  }
}

</mosaic_0001>

<llo_original>
// kernel: attribute_network_forward.1
$region0: #{attribute_network_forward.1}
  #allocation0 [shape = 'u32[]', space=smem, size = 0x4, offset = 0x4, fixed_abs, tag = 'smem constant byte address 0x4 - core index']
  #allocation1 [shape = 'u32[144,128]{1,0:T(1,128)}', space=vmem, size = 0x12000, scoped, tag = 'internal scratch']
  %s0 = inlined_call_operand.vmem [shape: f32[16,32], index: 0, kind: input, shape index: {}]
  %s1 = inlined_call_operand.vmem [shape: bf16[32,128], index: 1, kind: input, shape index: {}]
  %s2 = inlined_call_operand.vmem [shape: f32[1,128], index: 2, kind: input, shape index: {}]
  %s3 = inlined_call_operand.vmem [shape: bf16[128,128], index: 3, kind: input, shape index: {}]
  %s4 = inlined_call_operand.vmem [shape: f32[1,128], index: 4, kind: input, shape index: {}]
  %s5 = inlined_call_operand.vmem [shape: f32[16,128], index: 5, kind: output, shape index: {}]
  %s6 = sld [smem:[#allocation0]]
  $region30: #{attribute_network_forward.1} parent=0
    _
  %s8 = ssub.s32 1, %s6
  %s9 = scalar_select 0, %s8, %s6
  // Predicated region
  $region2: #{attribute_network_forward.1} parent=0 // pred_check
    _
  $region3: #{attribute_network_forward.1} parent=0 // pred_check_branch
    %11 = sbr.rel (0) target = $region5
  $region4: #{attribute_network_forward.1} parent=0 // pred_region
    _
  $region5: #{attribute_network_forward.1} parent=0 // pred_fallthru
    _
  // Predicated region
  $region6: #{attribute_network_forward.1} parent=0 // pred_check
    _
  $region7: #{attribute_network_forward.1} parent=0 // pred_check_branch
    %13 = sbr.rel (0) target = $region9
  $region8: #{attribute_network_forward.1} parent=0 // pred_region
    _
  $region9: #{attribute_network_forward.1} parent=0 // pred_fallthru
    _
  // Predicated region
  $region10: #{attribute_network_forward.1} parent=0 // pred_check
    _
  $region11: #{attribute_network_forward.1} parent=0 // pred_check_branch
    %15 = sbr.rel (0) target = $region13
  $region12: #{attribute_network_forward.1} parent=0 // pred_region
    _
  $region13: #{attribute_network_forward.1} parent=0 // pred_fallthru
    _
  // Predicated region
  $region14: #{attribute_network_forward.1} parent=0 // pred_check
    _
  $region15: #{attribute_network_forward.1} parent=0 // pred_check_branch
    %17 = sbr.rel (0) target = $region17
  $region16: #{attribute_network_forward.1} parent=0 // pred_region
    _
  $region17: #{attribute_network_forward.1} parent=0 // pred_fallthru
    _
  // Predicated region
  $region18: #{attribute_network_forward.1} parent=0 // pred_check
    _
  $region19: #{attribute_network_forward.1} parent=0 // pred_check_branch
    %19 = sbr.rel (0) target = $region21
  $region20: #{attribute_network_forward.1} parent=0 // pred_region
    _
  $region21: #{attribute_network_forward.1} parent=0 // pred_fallthru
    _
  %v21 = vld [vmem:[%s0] sm:$0xff]
  %v22 = vld [vmem:[%s0 + $0x8] sm:$0xff]
  %v23 = vpack.c.bf16 %v22, %v21
  %v24 = vld [vmem:[%s1] sm:$0xf]
  %v25 = vld [vmem:[%s1 + $0x4] sm:$0xf]
  %v26 = vld [vmem:[%s1 + $0x8] sm:$0xf]
  %v27 = vld [vmem:[%s1 + $0xc] sm:$0xf]
  %v28 = vld [vmem:[%s2] sm:$0x1]
  %v30 = vlaneseq
  %v31 = vshrl.u32 %v30, 7
  %v32 = vsub.s32 0, %v31
  %v33 = vrot.slane %v28, %v32
  %v39 = vunpack.c.l.b16 %v24
  %v40 = vunpack.c.l.b16 %v25
  %v41 = vunpack.c.l.b16 %v26
  %v42 = vunpack.c.l.b16 %v27
  %v43 = vpack.c.b16 %v40, %v39
  %v44 = vpack.c.b16 %v42, %v41
  %vm47 = vcmask 261120
  %v49 = vsel %vm47, %v23, 0
  %51 = vmatprep.subr.bf16.mxu0 0
  %52 = vmatpush1.bf16.msra.mxu0 %v43
  %53 = vmatprep.subr.bf16.mxu0 0
  %54 = vmatpush1.bf16.msra.mxu0 %v44
  %55 = vmatprep.subr.bf16.mxu0 0
  %56 = vmatpush1.bf16.msra.mxu0 0
  %57 = vmatprep.subr.bf16.mxu0 0
  %58 = vmatpush1.bf16.msra.mxu0 0
  %59 = vmatprep.subr.bf16.mxu0 0
  %60 = vmatpush1.bf16.msra.mxu0 0
  %61 = vmatprep.subr.bf16.mxu0 0
  %62 = vmatpush1.bf16.msra.mxu0 0
  %63 = vmatprep.subr.bf16.mxu0 0
  %64 = vmatpush1.bf16.msra.mxu0 0
  %65 = vmatprep.subr.bf16.mxu0 0
  %66 = vmatpush1.bf16.msra.mxu0 0
  %67 = vmatprep.subr.bf16.mxu0 0
  %68 = vmatpush1.bf16.msra.mxu0 0
  %69 = vmatprep.subr.bf16.mxu0 0
  %70 = vmatpush1.bf16.msra.mxu0 0
  %71 = vmatprep.subr.bf16.mxu0 0
  %72 = vmatpush1.bf16.msra.mxu0 0
  %73 = vmatprep.subr.bf16.mxu0 0
  %74 = vmatpush1.bf16.msra.mxu0 0
  %75 = vmatprep.subr.bf16.mxu0 0
  %76 = vmatpush1.bf16.msra.mxu0 0
  %77 = vmatprep.subr.bf16.mxu0 0
  %78 = vmatpush1.bf16.msra.mxu0 0
  %79 = vmatprep.subr.bf16.mxu0 0
  %80 = vmatpush1.bf16.msra.mxu0 0
  %81 = vmatprep.subr.bf16.mxu0 0
  %82 = vmatpush1.bf16.msra.mxu0 0
  %83 = vmatprep.mubr.bf16.mxu0 0
  %84 = vmatmul.mubr.bf16.gmra.mrb[0].mxu0 %v49
  %v85 = vpop.f32.mrb[0].mxu0
  %v86 = vadd.f32 %v33, %v85
  %v87 = vpop.f32.mrb[0].mxu0
  %v88 = vpop.f32.mrb[0].mxu0
  %v89 = vadd.f32 %v33, %v88
  %v90 = vpop.f32.mrb[0].mxu0
  %91 = vdwg.mxu0
  %v92 = vmax.f32 %v86, 0.0
  %v93 = vmax.f32 %v89, 0.0
  %v94 = vpack.c.bf16 %v93, %v92
  %v95 = vld [vmem:[%s3] sm:$0xf]
  %v96 = vld [vmem:[%s3 + $0x4] sm:$0xf]
  %v97 = vld [vmem:[%s3 + $0x8] sm:$0xf]
  %v98 = vld [vmem:[%s3 + $0xc] sm:$0xf]
  %v99 = vld [vmem:[%s3 + $0x10] sm:$0xf]
  %v100 = vld [vmem:[%s3 + $0x14] sm:$0xf]
  %v101 = vld [vmem:[%s3 + $0x18] sm:$0xf]
  %v102 = vld [vmem:[%s3 + $0x1c] sm:$0xf]
  %v103 = vld [vmem:[%s3 + $0x20] sm:$0xf]
  %v104 = vld [vmem:[%s3 + $0x24] sm:$0xf]
  %v105 = vld [vmem:[%s3 + $0x28] sm:$0xf]
  %v106 = vld [vmem:[%s3 + $0x2c] sm:$0xf]
  %v107 = vld [vmem:[%s3 + $0x30] sm:$0xf]
  %v108 = vld [vmem:[%s3 + $0x34] sm:$0xf]
  %v109 = vld [vmem:[%s3 + $0x38] sm:$0xf]
  %v110 = vld [vmem:[%s3 + $0x3c] sm:$0xf]
  %v111 = vld [vmem:[%s4] sm:$0x1]
  %v113 = vlaneseq
  %v114 = vshrl.u32 %v113, 7
  %v115 = vsub.s32 0, %v114
  %v116 = vrot.slane %v111, %v115
  %v134 = vunpack.c.l.b16 %v95
  %v135 = vunpack.c.l.b16 %v96
  %v136 = vunpack.c.l.b16 %v97
  %v137 = vunpack.c.l.b16 %v98
  %v138 = vunpack.c.l.b16 %v99
  %v139 = vunpack.c.l.b16 %v100
  %v140 = vunpack.c.l.b16 %v101
  %v141 = vunpack.c.l.b16 %v102
  %v142 = vunpack.c.l.b16 %v103
  %v143 = vunpack.c.l.b16 %v104
  %v144 = vunpack.c.l.b16 %v105
  %v145 = vunpack.c.l.b16 %v106
  %v146 = vunpack.c.l.b16 %v107
  %v147 = vunpack.c.l.b16 %v108
  %v148 = vunpack.c.l.b16 %v109
  %v149 = vunpack.c.l.b16 %v110
  %v150 = vpack.c.b16 %v135, %v134
  %v151 = vpack.c.b16 %v137, %v136
  %v152 = vpack.c.b16 %v139, %v138
  %v153 = vpack.c.b16 %v141, %v140
  %v154 = vpack.c.b16 %v143, %v142
  %v155 = vpack.c.b16 %v145, %v144
  %v156 = vpack.c.b16 %v147, %v146
  %v157 = vpack.c.b16 %v149, %v148
  %166 = vmatprep.subr.bf16.mxu0 0
  %167 = vmatpush1.bf16.msra.mxu0 %v150
  %168 = vmatprep.subr.bf16.mxu0 0
  %169 = vmatpush1.bf16.msra.mxu0 %v151
  %170 = vmatprep.subr.bf16.mxu0 0
  %171 = vmatpush1.bf16.msra.mxu0 %v152
  %172 = vmatprep.subr.bf16.mxu0 0
  %173 = vmatpush1.bf16.msra.mxu0 %v153
  %174 = vmatprep.subr.bf16.mxu0 0
  %175 = vmatpush1.bf16.msra.mxu0 %v154
  %176 = vmatprep.subr.bf16.mxu0 0
  %177 = vmatpush1.bf16.msra.mxu0 %v155
  %178 = vmatprep.subr.bf16.mxu0 0
  %179 = vmatpush1.bf16.msra.mxu0 %v156
  %180 = vmatprep.subr.bf16.mxu0 0
  %181 = vmatpush1.bf16.msra.mxu0 %v157
  %182 = vmatprep.subr.bf16.mxu0 0
  %183 = vmatpush1.bf16.msra.mxu0 0
  %184 = vmatprep.subr.bf16.mxu0 0
  %185 = vmatpush1.bf16.msra.mxu0 0
  %186 = vmatprep.subr.bf16.mxu0 0
  %187 = vmatpush1.bf16.msra.mxu0 0
  %188 = vmatprep.subr.bf16.mxu0 0
  %189 = vmatpush1.bf16.msra.mxu0 0
  %190 = vmatprep.subr.bf16.mxu0 0
  %191 = vmatpush1.bf16.msra.mxu0 0
  %192 = vmatprep.subr.bf16.mxu0 0
  %193 = vmatpush1.bf16.msra.mxu0 0
  %194 = vmatprep.subr.bf16.mxu0 0
  %195 = vmatpush1.bf16.msra.mxu0 0
  %196 = vmatprep.subr.bf16.mxu0 0
  %197 = vmatpush1.bf16.msra.mxu0 0
  %198 = vmatprep.mubr.bf16.mxu0 0
  %199 = vmatmul.mubr.bf16.gmra.mrb[0].mxu0 %v94
  %v200 = vpop.f32.mrb[0].mxu0
  %v201 = vadd.f32 %v116, %v200
  %v202 = vpop.f32.mrb[0].mxu0
  %v203 = vpop.f32.mrb[0].mxu0
  %v204 = vadd.f32 %v116, %v203
  %v205 = vpop.f32.mrb[0].mxu0
  %206 = vdwg.mxu0
  %v207 = vmax.f32 %v201, 0.0
  %v208 = vmax.f32 %v204, 0.0
  %209 = vst [vmem:[%s5] sm:$0xff] %v207
  %210 = vst [vmem:[%s5 + $0x8] sm:$0xff] %v208
  // Predicated region
  $region22: #{attribute_network_forward.1} parent=0 // pred_check
    _
  $region23: #{attribute_network_forward.1} parent=0 // pred_check_branch
    %212 = sbr.rel (0) target = $region25
  $region24: #{attribute_network_forward.1} parent=0 // pred_region
    _
  $region25: #{attribute_network_forward.1} parent=0 // pred_fallthru
    _
  // Predicated region
  $region26: #{attribute_network_forward.1} parent=0 // pred_check
    _
  $region27: #{attribute_network_forward.1} parent=0 // pred_check_branch
    %214 = sbr.rel (0) target = $region29
  $region28: #{attribute_network_forward.1} parent=0 // pred_region
    _
  $region29: #{attribute_network_forward.1} parent=0 // pred_fallthru
    _

</llo_original>
